<compile_context>
chip_gen: v7x
topology: tpu7x:2x2x1
jax: 0.10.0
libtpu: 0.0.40
codegen_flags: <defaults>
</compile_context>

<pallas_src>
import jax
import jax.numpy as jnp
from jax import lax
from jax.experimental import pallas as pl
from jax.experimental.pallas import tpu as pltpu

# Small, tile-aligned synthetic shapes.
B = 2      # batch
S = 8      # sequence length
N = B * S  # 16 rows -> one bf16-friendly (16, 128) block
H = 128    # hidden size (lane-aligned)
F = 256    # MLP intermediate size
V = 128    # vocab size (lane-aligned; also embedding rows, so argmax ids are valid)


# ---------------------------------------------------------------------------
# Fused pipeline kernel: detector -> argmax -> selector, all resident in VMEM
# ---------------------------------------------------------------------------
def pipeline_kernel(ids_ref, t1_ref, w2_ref, bias_ref, logits_ref):
    """ids (N,1) i32; t1 (2,V,F) bf16 = emb@W1; w2 (2,F,V) bf16;
    bias (2,F+V) f32 = [b1 | b2]; logits (2,N,V) f32 = [detector | selector]."""
    ids = ids_ref[...]                                             # (N, 1) int32
    col = lax.broadcasted_iota(jnp.int32, (N, V), 1)               # (N, V)

    def head(onehot_bf16, i):
        # Fused embedding + first matmul: onehot @ (emb @ W1) == (onehot @ emb) @ W1.
        h = jnp.dot(onehot_bf16, t1_ref[i],
                    preferred_element_type=jnp.float32)            # (N, F) f32
        # f32 bias + GELU epilogue (v5e has no bf16 VPU/EUP; keep f32 here).
        h = h + bias_ref[i:i + 1, 0:F]
        # TODO(synk): PyTorch nn.GELU defaults to the exact erf form; tanh
        # approx is used here for the EUP-friendly path (tiny numerical diff).
        h = jax.nn.gelu(h, approximate=True)
        logits = jnp.dot(h.astype(jnp.bfloat16), w2_ref[i],
                         preferred_element_type=jnp.float32)       # (N, V) f32
        return logits + bias_ref[i:i + 1, F:F + V]

    # --- detector: one-hot "gather" (MXU) through the fused table ---
    onehot_in = (col == ids).astype(jnp.bfloat16)                  # (N, V)
    det_logits = head(onehot_in, 0)
    logits_ref[0] = det_logits                                     # lane-dense store

    # --- detection post-processing (tensor part): argmax over vocab ---
    # softmax is monotone, so argmax(softmax(logits)) == argmax(logits); the
    # probabilities themselves are never written back (they were unused).
    # Ties resolve to the first maximal index (torch.argmax does not
    # guarantee this, but it only matters on exact ties).
    m = jnp.max(det_logits, axis=-1, keepdims=True)
    first_max = jnp.min(jnp.where(det_logits == m, col, V),
                        axis=-1, keepdims=True)                    # (N, 1)

    # TODO(synk): tokenizer.convert_ids_to_tokens / word2candidate lookups /
    # probability-threshold heuristic / sighan_error_correct_prompt are Python
    # string processing with no tensor equivalent; surrogate: re-embed the
    # detector argmax tokens as the selector's input.
    onehot_pred = (col == first_max).astype(jnp.bfloat16)          # (N, V)

    # --- selector: one-hot re-embedding (MXU) through its fused table ---
    sel_logits = head(onehot_pred, 1)
    logits_ref[1] = sel_logits


# ---------------------------------------------------------------------------
# Wrapper: single pallas_call, grid=(), everything resident in VMEM
# ---------------------------------------------------------------------------
_VMEM_SPEC = pl.BlockSpec(memory_space=pltpu.MemorySpace.VMEM)


def detec_correct_pipeline(input_ids, detector_params, selector_params):
    ids = input_ids.reshape(N, 1).astype(jnp.int32)

    def fuse(params):
        emb = params["emb"]
        w1, b1, w2, b2 = params["mlp"]
        # Precompute the fused embedding*W1 table in f32, round once to bf16.
        t1 = jnp.dot(emb.astype(jnp.float32),
                     w1.astype(jnp.float32)).astype(jnp.bfloat16)  # (V, F)
        bias = jnp.concatenate([b1, b2], axis=-1)                  # (1, F+V) f32
        return t1, w2, bias

    det_t1, det_w2, det_bias = fuse(detector_params)
    sel_t1, sel_w2, sel_bias = fuse(selector_params)

    t1 = jnp.stack([det_t1, sel_t1], axis=0)                       # (2, V, F) bf16
    w2 = jnp.stack([det_w2, sel_w2], axis=0)                       # (2, F, V) bf16
    bias = jnp.concatenate([det_bias, sel_bias], axis=0)           # (2, F+V) f32

    # Two heads x two matmuls each: onehot(N,V)@T1(V,F) and h(N,F)@W2(F,V).
    flops = 2 * (2 * N * V * F + 2 * N * F * V)
    bytes_accessed = (ids.size * 4 + t1.size * 2 + w2.size * 2
                      + bias.size * 4 + 2 * N * V * 4)
    cost = pl.CostEstimate(flops=flops, transcendentals=2 * N * F,
                           bytes_accessed=bytes_accessed)

    # NOTE: at N=16 a single grid=() invocation on one TC is optimal; once
    # N grows past ~256 rows, add a leading "parallel" row-grid axis so the
    # second v7x TensorCore gets work, and tile V (multiples of 128) with a
    # vmem_limit_bytes override for large vocabs.
    logits = pl.pallas_call(
        pipeline_kernel,
        out_shape=jax.ShapeDtypeStruct((2, N, V), jnp.float32),
        in_specs=[_VMEM_SPEC] * 4,
        out_specs=_VMEM_SPEC,
        cost_estimate=cost,
    )(ids, t1, w2, bias)

    return (logits[0].reshape(B, S, V), logits[1].reshape(B, S, V))


# ---------------------------------------------------------------------------
# Parameter init (deterministic, synthetic): bf16 matmul operands, f32 biases
# ---------------------------------------------------------------------------
def init_corrector_params(key):
    k_emb, k_w1, k_w2 = jax.random.split(key, 3)
    emb = (jax.random.normal(k_emb, (V, H), jnp.float32) * 0.02).astype(jnp.bfloat16)
    w1 = (jax.random.normal(k_w1, (H, F), jnp.float32) * 0.02).astype(jnp.bfloat16)
    b1 = jnp.zeros((1, F), jnp.float32)
    w2 = (jax.random.normal(k_w2, (F, V), jnp.float32) * 0.02).astype(jnp.bfloat16)
    b2 = jnp.zeros((1, V), jnp.float32)
    return {"emb": emb, "mlp": (w1, b1, w2, b2)}


if __name__ == "__main__":
    root = jax.random.PRNGKey(0)
    k_det, k_sel, k_ids = jax.random.split(root, 3)

    detector_params = init_corrector_params(k_det)
    selector_params = init_corrector_params(k_sel)

    input_ids = jax.random.randint(k_ids, (B, S), 0, V, dtype=jnp.int32)

    fwd = jax.jit(detec_correct_pipeline)
    batch_logits, prompt_logits = fwd(input_ids, detector_params, selector_params)
    jax.block_until_ready((batch_logits, prompt_logits))

    assert batch_logits.shape == (B, S, V)
    assert prompt_logits.shape == (B, S, V)
    assert batch_logits.dtype == jnp.float32
    assert prompt_logits.dtype == jnp.float32
    assert bool(jnp.all(jnp.isfinite(batch_logits)))
    assert bool(jnp.all(jnp.isfinite(prompt_logits)))
    print("KERNEL_OK")
</pallas_src>

<mosaic_0001>
module attributes {stable_mosaic.version = 11 : i64} {
  func.func @pipeline_kernel(%arg0: memref<16x1xi32, #tpu.memory_space<vmem>>, %arg1: memref<2x128x256xbf16, #tpu.memory_space<vmem>>, %arg2: memref<2x256x128xbf16, #tpu.memory_space<vmem>>, %arg3: memref<2x384xf32, #tpu.memory_space<vmem>>, %arg4: memref<2x16x128xf32, #tpu.memory_space<vmem>>) attributes {dimension_semantics = [], scalar_prefetch = 0 : i64, scratch_operands = 0 : i64, tpu.core_type = #tpu.core_type<tc>} {
    %c0 = arith.constant 0 : index
    %c0_0 = arith.constant 0 : index
    %0 = vector.load %arg0[%c0, %c0_0] : memref<16x1xi32, #tpu.memory_space<vmem>>, vector<16x1xi32>
    %1 = tpu.iota {dimensions = array<i32: 1>} : vector<16x128xi32>
    %2 = vector.broadcast %0 : vector<16x1xi32> to vector<16x128xi32>
    %3 = arith.cmpi eq, %1, %2 : vector<16x128xi32>
    %4 = arith.extui %3 : vector<16x128xi1> to vector<16x128xi32>
    %5 = arith.sitofp %4 : vector<16x128xi32> to vector<16x128xf32>
    %6 = arith.truncf %5 : vector<16x128xf32> to vector<16x128xbf16>
    %c0_1 = arith.constant 0 : index
    %c0_2 = arith.constant 0 : index
    %c0_3 = arith.constant 0 : index
    %7 = vector.load %arg1[%c0_1, %c0_2, %c0_3] : memref<2x128x256xbf16, #tpu.memory_space<vmem>>, vector<1x128x256xbf16>
    %8 = vector.shape_cast %7 : vector<1x128x256xbf16> to vector<128x256xbf16>
    %cst = arith.constant dense<0.000000e+00> : vector<16x256xf32>
    %9 = tpu.matmul %6, %8, %cst {dimension_numbers = #tpu.dot_dimension_numbers<[1], [0], [0], [1], [0, 0, 1, 1], [], []>} : vector<16x128xbf16>, vector<128x256xbf16>, vector<16x256xf32> -> vector<16x256xf32>
    %c0_4 = arith.constant 0 : index
    %c0_5 = arith.constant 0 : index
    %10 = vector.load %arg3[%c0_4, %c0_5] : memref<2x384xf32, #tpu.memory_space<vmem>>, vector<1x256xf32>
    %11 = vector.broadcast %10 : vector<1x256xf32> to vector<16x256xf32>
    %12 = arith.addf %9, %11 : vector<16x256xf32>
    %13 = arith.mulf %12, %12 : vector<16x256xf32>
    %14 = arith.mulf %12, %13 : vector<16x256xf32>
    %cst_6 = arith.constant 4.471500e-02 : f32
    %15 = vector.broadcast %cst_6 : f32 to vector<16x256xf32>
    %16 = arith.mulf %15, %14 : vector<16x256xf32>
    %17 = arith.addf %12, %16 : vector<16x256xf32>
    %cst_7 = arith.constant 0.797884583 : f32
    %18 = vector.broadcast %cst_7 : f32 to vector<16x256xf32>
    %19 = arith.mulf %18, %17 : vector<16x256xf32>
    %20 = math.tanh %19 : vector<16x256xf32>
    %cst_8 = arith.constant 1.000000e+00 : f32
    %21 = vector.broadcast %cst_8 : f32 to vector<16x256xf32>
    %22 = arith.addf %21, %20 : vector<16x256xf32>
    %cst_9 = arith.constant 5.000000e-01 : f32
    %23 = vector.broadcast %cst_9 : f32 to vector<16x256xf32>
    %24 = arith.mulf %23, %22 : vector<16x256xf32>
    %25 = arith.mulf %12, %24 : vector<16x256xf32>
    %26 = arith.truncf %25 : vector<16x256xf32> to vector<16x256xbf16>
    %c0_10 = arith.constant 0 : index
    %c0_11 = arith.constant 0 : index
    %c0_12 = arith.constant 0 : index
    %27 = vector.load %arg2[%c0_10, %c0_11, %c0_12] : memref<2x256x128xbf16, #tpu.memory_space<vmem>>, vector<1x256x128xbf16>
    %28 = vector.shape_cast %27 : vector<1x256x128xbf16> to vector<256x128xbf16>
    %cst_13 = arith.constant dense<0.000000e+00> : vector<16x128xf32>
    %29 = tpu.matmul %26, %28, %cst_13 {dimension_numbers = #tpu.dot_dimension_numbers<[1], [0], [0], [1], [0, 0, 1, 1], [], []>} : vector<16x256xbf16>, vector<256x128xbf16>, vector<16x128xf32> -> vector<16x128xf32>
    %c0_14 = arith.constant 0 : index
    %c256 = arith.constant 256 : index
    %30 = vector.load %arg3[%c0_14, %c256] : memref<2x384xf32, #tpu.memory_space<vmem>>, vector<1x128xf32>
    %31 = vector.broadcast %30 : vector<1x128xf32> to vector<16x128xf32>
    %32 = arith.addf %29, %31 : vector<16x128xf32>
    %c0_15 = arith.constant 0 : index
    %c0_16 = arith.constant 0 : index
    %c0_17 = arith.constant 0 : index
    %33 = vector.load %arg4[%c0_15, %c0_16, %c0_17] : memref<2x16x128xf32, #tpu.memory_space<vmem>>, vector<1x16x128xf32>
    %34 = vector.shape_cast %33 : vector<1x16x128xf32> to vector<16x128xf32>
    %35 = vector.shape_cast %32 : vector<16x128xf32> to vector<1x16x128xf32>
    tpu.vector_store %arg4[%c0_15, %c0_16, %c0_17], %35 {strides = array<i32>} : memref<2x16x128xf32, #tpu.memory_space<vmem>>, vector<1x16x128xf32>,
    %cst_18 = arith.constant dense<0xFF800000> : vector<16xf32>
    %36 = vector.multi_reduction <maximumf>, %32, %cst_18 [1] : vector<16x128xf32> to vector<16xf32>
    %37 = vector.shape_cast %36 : vector<16xf32> to vector<16x1xf32>
    %38 = vector.broadcast %37 : vector<16x1xf32> to vector<16x128xf32>
    %39 = arith.cmpf oeq, %32, %38 : vector<16x128xf32>
    %c128_i32 = arith.constant 128 : i32
    %40 = vector.broadcast %c128_i32 : i32 to vector<16x128xi32>
    %41 = arith.select %39, %1, %40 : vector<16x128xi1>, vector<16x128xi32>
    %cst_19 = arith.constant dense<2147483647> : vector<16xi32>
    %42 = vector.multi_reduction <minsi>, %41, %cst_19 [1] : vector<16x128xi32> to vector<16xi32>
    %43 = vector.shape_cast %42 : vector<16xi32> to vector<16x1xi32>
    %44 = vector.broadcast %43 : vector<16x1xi32> to vector<16x128xi32>
    %45 = arith.cmpi eq, %1, %44 : vector<16x128xi32>
    %46 = arith.extui %45 : vector<16x128xi1> to vector<16x128xi32>
    %47 = arith.sitofp %46 : vector<16x128xi32> to vector<16x128xf32>
    %48 = arith.truncf %47 : vector<16x128xf32> to vector<16x128xbf16>
    %c1 = arith.constant 1 : index
    %c0_20 = arith.constant 0 : index
    %c0_21 = arith.constant 0 : index
    %49 = vector.load %arg1[%c1, %c0_20, %c0_21] : memref<2x128x256xbf16, #tpu.memory_space<vmem>>, vector<1x128x256xbf16>
    %50 = vector.shape_cast %49 : vector<1x128x256xbf16> to vector<128x256xbf16>
    %cst_22 = arith.constant dense<0.000000e+00> : vector<16x256xf32>
    %51 = tpu.matmul %48, %50, %cst_22 {dimension_numbers = #tpu.dot_dimension_numbers<[1], [0], [0], [1], [0, 0, 1, 1], [], []>} : vector<16x128xbf16>, vector<128x256xbf16>, vector<16x256xf32> -> vector<16x256xf32>
    %c1_23 = arith.constant 1 : index
    %c0_24 = arith.constant 0 : index
    %52 = vector.load %arg3[%c1_23, %c0_24] : memref<2x384xf32, #tpu.memory_space<vmem>>, vector<1x256xf32>
    %53 = vector.broadcast %52 : vector<1x256xf32> to vector<16x256xf32>
    %54 = arith.addf %51, %53 : vector<16x256xf32>
    %55 = arith.mulf %54, %54 : vector<16x256xf32>
    %56 = arith.mulf %54, %55 : vector<16x256xf32>
    %cst_25 = arith.constant 4.471500e-02 : f32
    %57 = vector.broadcast %cst_25 : f32 to vector<16x256xf32>
    %58 = arith.mulf %57, %56 : vector<16x256xf32>
    %59 = arith.addf %54, %58 : vector<16x256xf32>
    %cst_26 = arith.constant 0.797884583 : f32
    %60 = vector.broadcast %cst_26 : f32 to vector<16x256xf32>
    %61 = arith.mulf %60, %59 : vector<16x256xf32>
    %62 = math.tanh %61 : vector<16x256xf32>
    %cst_27 = arith.constant 1.000000e+00 : f32
    %63 = vector.broadcast %cst_27 : f32 to vector<16x256xf32>
    %64 = arith.addf %63, %62 : vector<16x256xf32>
    %cst_28 = arith.constant 5.000000e-01 : f32
    %65 = vector.broadcast %cst_28 : f32 to vector<16x256xf32>
    %66 = arith.mulf %65, %64 : vector<16x256xf32>
    %67 = arith.mulf %54, %66 : vector<16x256xf32>
    %68 = arith.truncf %67 : vector<16x256xf32> to vector<16x256xbf16>
    %c1_29 = arith.constant 1 : index
    %c0_30 = arith.constant 0 : index
    %c0_31 = arith.constant 0 : index
    %69 = vector.load %arg2[%c1_29, %c0_30, %c0_31] : memref<2x256x128xbf16, #tpu.memory_space<vmem>>, vector<1x256x128xbf16>
    %70 = vector.shape_cast %69 : vector<1x256x128xbf16> to vector<256x128xbf16>
    %cst_32 = arith.constant dense<0.000000e+00> : vector<16x128xf32>
    %71 = tpu.matmul %68, %70, %cst_32 {dimension_numbers = #tpu.dot_dimension_numbers<[1], [0], [0], [1], [0, 0, 1, 1], [], []>} : vector<16x256xbf16>, vector<256x128xbf16>, vector<16x128xf32> -> vector<16x128xf32>
    %c1_33 = arith.constant 1 : index
    %c256_34 = arith.constant 256 : index
    %72 = vector.load %arg3[%c1_33, %c256_34] : memref<2x384xf32, #tpu.memory_space<vmem>>, vector<1x128xf32>
    %73 = vector.broadcast %72 : vector<1x128xf32> to vector<16x128xf32>
    %74 = arith.addf %71, %73 : vector<16x128xf32>
    %c1_35 = arith.constant 1 : index
    %c0_36 = arith.constant 0 : index
    %c0_37 = arith.constant 0 : index
    %75 = vector.load %arg4[%c1_35, %c0_36, %c0_37] : memref<2x16x128xf32, #tpu.memory_space<vmem>>, vector<1x16x128xf32>
    %76 = vector.shape_cast %75 : vector<1x16x128xf32> to vector<16x128xf32>
    %77 = vector.shape_cast %74 : vector<16x128xf32> to vector<1x16x128xf32>
    tpu.vector_store %arg4[%c1_35, %c0_36, %c0_37], %77 {strides = array<i32>} : memref<2x16x128xf32, #tpu.memory_space<vmem>>, vector<1x16x128xf32>,
    return
  }
}

</mosaic_0001>

<llo_original>
// kernel: detec_correct_pipeline.1
$region0: #{detec_correct_pipeline.1}
  #allocation0 [shape = 'u32[]', space=smem, size = 0x4, offset = 0x4, fixed_abs, tag = 'smem constant byte address 0x4 - core index']
  #allocation1 [shape = 'u32[144,128]{1,0:T(1,128)}', space=vmem, size = 0x12000, scoped, tag = 'internal scratch']
  %s0 = inlined_call_operand.vmem [shape: s32[16,1], index: 0, kind: input, shape index: {}]
  %s1 = inlined_call_operand.vmem [shape: bf16[2,128,256], index: 1, kind: input, shape index: {}]
  %s2 = inlined_call_operand.vmem [shape: bf16[2,256,128], index: 2, kind: input, shape index: {}]
  %s3 = inlined_call_operand.vmem [shape: f32[2,384], index: 3, kind: input, shape index: {}]
  %s4 = inlined_call_operand.vmem [shape: f32[2,16,128], index: 4, kind: output, shape index: {}]
  %s5 = sld [smem:[#allocation0]]
  $region26: #{detec_correct_pipeline.1} parent=0
    _
  %s7 = ssub.s32 1, %s5
  %s8 = scalar_select 0, %s7, %s5
  // Predicated region
  $region2: #{detec_correct_pipeline.1} parent=0 // pred_check
    _
  $region3: #{detec_correct_pipeline.1} parent=0 // pred_check_branch
    %10 = sbr.rel (0) target = $region5
  $region4: #{detec_correct_pipeline.1} parent=0 // pred_region
    _
  $region5: #{detec_correct_pipeline.1} parent=0 // pred_fallthru
    _
  // Predicated region
  $region6: #{detec_correct_pipeline.1} parent=0 // pred_check
    _
  $region7: #{detec_correct_pipeline.1} parent=0 // pred_check_branch
    %12 = sbr.rel (0) target = $region9
  $region8: #{detec_correct_pipeline.1} parent=0 // pred_region
    _
  $region9: #{detec_correct_pipeline.1} parent=0 // pred_fallthru
    _
  // Predicated region
  $region10: #{detec_correct_pipeline.1} parent=0 // pred_check
    _
  $region11: #{detec_correct_pipeline.1} parent=0 // pred_check_branch
    %14 = sbr.rel (0) target = $region13
  $region12: #{detec_correct_pipeline.1} parent=0 // pred_region
    _
  $region13: #{detec_correct_pipeline.1} parent=0 // pred_fallthru
    _
  // Predicated region
  $region14: #{detec_correct_pipeline.1} parent=0 // pred_check
    _
  $region15: #{detec_correct_pipeline.1} parent=0 // pred_check_branch
    %16 = sbr.rel (0) target = $region17
  $region16: #{detec_correct_pipeline.1} parent=0 // pred_region
    _
  $region17: #{detec_correct_pipeline.1} parent=0 // pred_fallthru
    _
  %v18 = vld [vmem:[%s0] sm:$0xff]
  %v19 = vld [vmem:[%s0 + $0x8] sm:$0xff]
  %v20 = vlaneseq
  %v21 = vand.u32 %v20, 127
  %22 = vset.pattern.permute.xlu0 0
  %23 = vperm.xlu0 %22, %v18
  %v24 = vpop.permute.xlu0 %23
  %25 = vset.pattern.permute.xlu0 0
  %26 = vperm.xlu0 %25, %v19
  %v27 = vpop.permute.xlu0 %26
  %vm28 = vcmp.eq.s32.totalorder %v21, %v24
  %vm29 = vcmp.eq.s32.totalorder %v21, %v27
  %v30 = vsel %vm28, 1, 0
  %v31 = vsel %vm29, 1, 0
  %v32 = vcvt.s32.f32 %v30
  %v33 = vcvt.s32.f32 %v31
  %v34 = vpack.c.bf16 %v33, %v32
  %v35 = vld [vmem:[%s1] sm:$0xff]
  %v36 = vld [vmem:[%s1 + $0x8] sm:$0xff]
  %v37 = vld [vmem:[%s1 + $0x10] sm:$0xff]
  %v38 = vld [vmem:[%s1 + $0x18] sm:$0xff]
  %v39 = vld [vmem:[%s1 + $0x20] sm:$0xff]
  %v40 = vld [vmem:[%s1 + $0x28] sm:$0xff]
  %v41 = vld [vmem:[%s1 + $0x30] sm:$0xff]
  %v42 = vld [vmem:[%s1 + $0x38] sm:$0xff]
  %v43 = vld [vmem:[%s1 + $0x40] sm:$0xff]
  %v44 = vld [vmem:[%s1 + $0x48] sm:$0xff]
  %v45 = vld [vmem:[%s1 + $0x50] sm:$0xff]
  %v46 = vld [vmem:[%s1 + $0x58] sm:$0xff]
  %v47 = vld [vmem:[%s1 + $0x60] sm:$0xff]
  %v48 = vld [vmem:[%s1 + $0x68] sm:$0xff]
  %v49 = vld [vmem:[%s1 + $0x70] sm:$0xff]
  %v50 = vld [vmem:[%s1 + $0x78] sm:$0xff]
  %v51 = vld [vmem:[%s3] ss:$2 sm:$0x3]
  %v53 = vlaneseq
  %v54 = vshrl.u32 %v53, 7
  %v55 = vsub.s32 0, %v54
  %v56 = vrot.slane %v51, %v55
  %v57 = vlaneseq
  %v58 = vshrl.u32 %v57, 7
  %v59 = vsub.s32 1, %v58
  %v60 = vrot.slane %v51, %v59
  %v79 = vunpack.c.l.b16 %v35
  %v80 = vunpack.c.h.b16 %v35
  %v81 = vunpack.c.l.b16 %v36
  %v82 = vunpack.c.h.b16 %v36
  %v83 = vunpack.c.l.b16 %v37
  %v84 = vunpack.c.h.b16 %v37
  %v85 = vunpack.c.l.b16 %v38
  %v86 = vunpack.c.h.b16 %v38
  %v87 = vunpack.c.l.b16 %v39
  %v88 = vunpack.c.h.b16 %v39
  %v89 = vunpack.c.l.b16 %v40
  %v90 = vunpack.c.h.b16 %v40
  %v91 = vunpack.c.l.b16 %v41
  %v92 = vunpack.c.h.b16 %v41
  %v93 = vunpack.c.l.b16 %v42
  %v94 = vunpack.c.h.b16 %v42
  %v95 = vunpack.c.l.b16 %v43
  %v96 = vunpack.c.h.b16 %v43
  %v97 = vunpack.c.l.b16 %v44
  %v98 = vunpack.c.h.b16 %v44
  %v99 = vunpack.c.l.b16 %v45
  %v100 = vunpack.c.h.b16 %v45
  %v101 = vunpack.c.l.b16 %v46
  %v102 = vunpack.c.h.b16 %v46
  %v103 = vunpack.c.l.b16 %v47
  %v104 = vunpack.c.h.b16 %v47
  %v105 = vunpack.c.l.b16 %v48
  %v106 = vunpack.c.h.b16 %v48
  %v107 = vunpack.c.l.b16 %v49
  %v108 = vunpack.c.h.b16 %v49
  %v109 = vunpack.c.l.b16 %v50
  %v110 = vunpack.c.h.b16 %v50
  %v111 = vpack.c.b16 %v81, %v79
  %v112 = vpack.c.b16 %v82, %v80
  %v113 = vpack.c.b16 %v85, %v83
  %v114 = vpack.c.b16 %v86, %v84
  %v115 = vpack.c.b16 %v89, %v87
  %v116 = vpack.c.b16 %v90, %v88
  %v117 = vpack.c.b16 %v93, %v91
  %v118 = vpack.c.b16 %v94, %v92
  %v119 = vpack.c.b16 %v97, %v95
  %v120 = vpack.c.b16 %v98, %v96
  %v121 = vpack.c.b16 %v101, %v99
  %v122 = vpack.c.b16 %v102, %v100
  %v123 = vpack.c.b16 %v105, %v103
  %v124 = vpack.c.b16 %v106, %v104
  %v125 = vpack.c.b16 %v109, %v107
  %v126 = vpack.c.b16 %v110, %v108
  %143 = vmatprep.subr.bf16.mxu0 %v112
  %144 = vmatpush1.bf16.msra.mxu0 %v111
  %145 = vmatprep.subr.bf16.mxu0 %v114
  %146 = vmatpush1.bf16.msra.mxu0 %v113
  %147 = vmatprep.subr.bf16.mxu0 %v116
  %148 = vmatpush1.bf16.msra.mxu0 %v115
  %149 = vmatprep.subr.bf16.mxu0 %v118
  %150 = vmatpush1.bf16.msra.mxu0 %v117
  %151 = vmatprep.subr.bf16.mxu0 %v120
  %152 = vmatpush1.bf16.msra.mxu0 %v119
  %153 = vmatprep.subr.bf16.mxu0 %v122
  %154 = vmatpush1.bf16.msra.mxu0 %v121
  %155 = vmatprep.subr.bf16.mxu0 %v124
  %156 = vmatpush1.bf16.msra.mxu0 %v123
  %157 = vmatprep.subr.bf16.mxu0 %v126
  %158 = vmatpush1.bf16.msra.mxu0 %v125
  %159 = vmatprep.subr.bf16.mxu0 0
  %160 = vmatpush1.bf16.msra.mxu0 0
  %161 = vmatprep.subr.bf16.mxu0 0
  %162 = vmatpush1.bf16.msra.mxu0 0
  %163 = vmatprep.subr.bf16.mxu0 0
  %164 = vmatpush1.bf16.msra.mxu0 0
  %165 = vmatprep.subr.bf16.mxu0 0
  %166 = vmatpush1.bf16.msra.mxu0 0
  %167 = vmatprep.subr.bf16.mxu0 0
  %168 = vmatpush1.bf16.msra.mxu0 0
  %169 = vmatprep.subr.bf16.mxu0 0
  %170 = vmatpush1.bf16.msra.mxu0 0
  %171 = vmatprep.subr.bf16.mxu0 0
  %172 = vmatpush1.bf16.msra.mxu0 0
  %173 = vmatprep.subr.bf16.mxu0 0
  %174 = vmatpush1.bf16.msra.mxu0 0
  %175 = vmatprep.mubr.bf16.mxu0 0
  %176 = vmatmul.mubr.bf16.gmra.mrb[0].mxu0 %v34
  %v177 = vpop.f32.mrb[0].mxu0
  %v178 = vadd.f32 %v56, %v177
  %v179 = vpop.f32.mrb[0].mxu0
  %v180 = vadd.f32 %v60, %v179
  %v181 = vpop.f32.mrb[0].mxu0
  %v182 = vadd.f32 %v56, %v181
  %v183 = vpop.f32.mrb[0].mxu0
  %v184 = vadd.f32 %v60, %v183
  %185 = vdwg.mxu0
  %v186 = vmul.f32 %v178, %v178
  %v187 = vmul.f32 %v180, %v180
  %v188 = vmul.f32 %v182, %v182
  %v189 = vmul.f32 %v184, %v184
  %v190 = vmul.f32 %v178, %v186
  %v191 = vmul.f32 %v180, %v187
  %v192 = vmul.f32 %v182, %v188
  %v193 = vmul.f32 %v184, %v189
  %v194 = vmul.f32 %v190, 0.044715
  %v195 = vmul.f32 %v191, 0.044715
  %v196 = vmul.f32 %v192, 0.044715
  %v197 = vmul.f32 %v193, 0.044715
  %v198 = vadd.f32 %v178, %v194
  %v199 = vadd.f32 %v180, %v195
  %v200 = vadd.f32 %v182, %v196
  %v201 = vadd.f32 %v184, %v197
  %v202 = vmul.f32 %v198, 0.7978846
  %v203 = vmul.f32 %v199, 0.7978846
  %v204 = vmul.f32 %v200, 0.7978846
  %v205 = vmul.f32 %v201, 0.7978846
  %v206 = vtanh.pop %v202
  %v207 = vtanh.pop %v203
  %v208 = vtanh.pop %v204
  %v209 = vtanh.pop %v205
  %v210 = vadd.f32 %v206, 1.0
  %v211 = vadd.f32 %v207, 1.0
  %v212 = vadd.f32 %v208, 1.0
  %v213 = vadd.f32 %v209, 1.0
  %v214 = vmul.f32 %v210, 0.5
  %v215 = vmul.f32 %v211, 0.5
  %v216 = vmul.f32 %v212, 0.5
  %v217 = vmul.f32 %v213, 0.5
  %v218 = vmul.f32 %v178, %v214
  %v219 = vmul.f32 %v180, %v215
  %v220 = vmul.f32 %v182, %v216
  %v221 = vmul.f32 %v184, %v217
  %v222 = vpack.c.bf16 %v220, %v218
  %v223 = vpack.c.bf16 %v221, %v219
  %v224 = vld [vmem:[%s2] sm:$0xf]
  %v225 = vld [vmem:[%s2 + $0x4] sm:$0xf]
  %v226 = vld [vmem:[%s2 + $0x8] sm:$0xf]
  %v227 = vld [vmem:[%s2 + $0xc] sm:$0xf]
  %v228 = vld [vmem:[%s2 + $0x10] sm:$0xf]
  %v229 = vld [vmem:[%s2 + $0x14] sm:$0xf]
  %v230 = vld [vmem:[%s2 + $0x18] sm:$0xf]
  %v231 = vld [vmem:[%s2 + $0x1c] sm:$0xf]
  %v232 = vld [vmem:[%s2 + $0x20] sm:$0xf]
  %v233 = vld [vmem:[%s2 + $0x24] sm:$0xf]
  %v234 = vld [vmem:[%s2 + $0x28] sm:$0xf]
  %v235 = vld [vmem:[%s2 + $0x2c] sm:$0xf]
  %v236 = vld [vmem:[%s2 + $0x30] sm:$0xf]
  %v237 = vld [vmem:[%s2 + $0x34] sm:$0xf]
  %v238 = vld [vmem:[%s2 + $0x38] sm:$0xf]
  %v239 = vld [vmem:[%s2 + $0x3c] sm:$0xf]
  %v240 = vld [vmem:[%s2 + $0x40] sm:$0xf]
  %v241 = vld [vmem:[%s2 + $0x44] sm:$0xf]
  %v242 = vld [vmem:[%s2 + $0x48] sm:$0xf]
  %v243 = vld [vmem:[%s2 + $0x4c] sm:$0xf]
  %v244 = vld [vmem:[%s2 + $0x50] sm:$0xf]
  %v245 = vld [vmem:[%s2 + $0x54] sm:$0xf]
  %v246 = vld [vmem:[%s2 + $0x58] sm:$0xf]
  %v247 = vld [vmem:[%s2 + $0x5c] sm:$0xf]
  %v248 = vld [vmem:[%s2 + $0x60] sm:$0xf]
  %v249 = vld [vmem:[%s2 + $0x64] sm:$0xf]
  %v250 = vld [vmem:[%s2 + $0x68] sm:$0xf]
  %v251 = vld [vmem:[%s2 + $0x6c] sm:$0xf]
  %v252 = vld [vmem:[%s2 + $0x70] sm:$0xf]
  %v253 = vld [vmem:[%s2 + $0x74] sm:$0xf]
  %v254 = vld [vmem:[%s2 + $0x78] sm:$0xf]
  %v255 = vld [vmem:[%s2 + $0x7c] sm:$0xf]
  %v256 = vld [vmem:[%s3 + $0x4] sm:$0x1]
  %v257 = vlaneseq
  %v258 = vshrl.u32 %v257, 7
  %v259 = vsub.s32 0, %v258
  %v260 = vrot.slane %v256, %v259
  %v293 = vunpack.c.l.b16 %v224
  %v294 = vunpack.c.l.b16 %v225
  %v295 = vunpack.c.l.b16 %v226
  %v296 = vunpack.c.l.b16 %v227
  %v297 = vunpack.c.l.b16 %v228
  %v298 = vunpack.c.l.b16 %v229
  %v299 = vunpack.c.l.b16 %v230
  %v300 = vunpack.c.l.b16 %v231
  %v301 = vunpack.c.l.b16 %v232
  %v302 = vunpack.c.l.b16 %v233
  %v303 = vunpack.c.l.b16 %v234
  %v304 = vunpack.c.l.b16 %v235
  %v305 = vunpack.c.l.b16 %v236
  %v306 = vunpack.c.l.b16 %v237
  %v307 = vunpack.c.l.b16 %v238
  %v308 = vunpack.c.l.b16 %v239
  %v309 = vunpack.c.l.b16 %v240
  %v310 = vunpack.c.l.b16 %v241
  %v311 = vunpack.c.l.b16 %v242
  %v312 = vunpack.c.l.b16 %v243
  %v313 = vunpack.c.l.b16 %v244
  %v314 = vunpack.c.l.b16 %v245
  %v315 = vunpack.c.l.b16 %v246
  %v316 = vunpack.c.l.b16 %v247
  %v317 = vunpack.c.l.b16 %v248
  %v318 = vunpack.c.l.b16 %v249
  %v319 = vunpack.c.l.b16 %v250
  %v320 = vunpack.c.l.b16 %v251
  %v321 = vunpack.c.l.b16 %v252
  %v322 = vunpack.c.l.b16 %v253
  %v323 = vunpack.c.l.b16 %v254
  %v324 = vunpack.c.l.b16 %v255
  %v325 = vpack.c.b16 %v294, %v293
  %v326 = vpack.c.b16 %v296, %v295
  %v327 = vpack.c.b16 %v298, %v297
  %v328 = vpack.c.b16 %v300, %v299
  %v329 = vpack.c.b16 %v302, %v301
  %v330 = vpack.c.b16 %v304, %v303
  %v331 = vpack.c.b16 %v306, %v305
  %v332 = vpack.c.b16 %v308, %v307
  %v333 = vpack.c.b16 %v310, %v309
  %v334 = vpack.c.b16 %v312, %v311
  %v335 = vpack.c.b16 %v314, %v313
  %v336 = vpack.c.b16 %v316, %v315
  %v337 = vpack.c.b16 %v318, %v317
  %v338 = vpack.c.b16 %v320, %v319
  %v339 = vpack.c.b16 %v322, %v321
  %v340 = vpack.c.b16 %v324, %v323
  %357 = vmatprep.subr.bf16.mxu0 0
  %358 = vmatpush1.bf16.msra.mxu0 %v325
  %359 = vmatprep.subr.bf16.mxu0 0
  %360 = vmatpush1.bf16.msra.mxu0 %v326
  %361 = vmatprep.subr.bf16.mxu0 0
  %362 = vmatpush1.bf16.msra.mxu0 %v327
  %363 = vmatprep.subr.bf16.mxu0 0
  %364 = vmatpush1.bf16.msra.mxu0 %v328
  %365 = vmatprep.subr.bf16.mxu0 0
  %366 = vmatpush1.bf16.msra.mxu0 %v329
  %367 = vmatprep.subr.bf16.mxu0 0
  %368 = vmatpush1.bf16.msra.mxu0 %v330
  %369 = vmatprep.subr.bf16.mxu0 0
  %370 = vmatpush1.bf16.msra.mxu0 %v331
  %371 = vmatprep.subr.bf16.mxu0 0
  %372 = vmatpush1.bf16.msra.mxu0 %v332
  %373 = vmatprep.subr.bf16.mxu0 0
  %374 = vmatpush1.bf16.msra.mxu0 %v333
  %375 = vmatprep.subr.bf16.mxu0 0
  %376 = vmatpush1.bf16.msra.mxu0 %v334
  %377 = vmatprep.subr.bf16.mxu0 0
  %378 = vmatpush1.bf16.msra.mxu0 %v335
  %379 = vmatprep.subr.bf16.mxu0 0
  %380 = vmatpush1.bf16.msra.mxu0 %v336
  %381 = vmatprep.subr.bf16.mxu0 0
  %382 = vmatpush1.bf16.msra.mxu0 %v337
  %383 = vmatprep.subr.bf16.mxu0 0
  %384 = vmatpush1.bf16.msra.mxu0 %v338
  %385 = vmatprep.subr.bf16.mxu0 0
  %386 = vmatpush1.bf16.msra.mxu0 %v339
  %387 = vmatprep.subr.bf16.mxu0 0
  %388 = vmatpush1.bf16.msra.mxu0 %v340
  %389 = vmatprep.mubr.bf16.mxu0 %v223
  %390 = vmatmul.mubr.bf16.gmra.mrb[0].mxu0 %v222
  %v391 = vpop.f32.mrb[0].mxu0
  %v392 = vadd.f32 %v260, %v391
  %v393 = vpop.f32.mrb[0].mxu0
  %v394 = vpop.f32.mrb[0].mxu0
  %v395 = vadd.f32 %v260, %v394
  %v396 = vpop.f32.mrb[0].mxu0
  %397 = vdwg.mxu0
  %398 = vst [vmem:[%s4] sm:$0xff] %v392
  %399 = vst [vmem:[%s4 + $0x8] sm:$0xff] %v395
  %400 = vmax.xlane.f32.xlu0 %v392
  %v401 = vpop.xlane.xlu0 %400
  %402 = vmax.xlane.f32.xlu0 %v395
  %v403 = vpop.xlane.xlu0 %402
  %vm404 = vcmp.eq.f32.partialorder %v392, %v401
  %vm405 = vcmp.eq.f32.partialorder %v395, %v403
  %v406 = vsel %vm404, %v21, 128
  %v407 = vsel %vm405, %v21, 128
  %v408 = vand.u32 %v406, 65535
  %v409 = vshra.s32 %v406, 16
  %v410 = vcvt.s32.f32 %v408
  %v411 = vcvt.s32.f32 %v409
  %412 = vmin.xlane.f32.xlu0 %v411
  %v413 = vpop.xlane.xlu0 %412
  %vm414 = vcmp.eq.f32.partialorder %v411, %v413
  %v415 = vsel %vm414, %v410, inf
  %416 = vmin.xlane.f32.xlu0 %v415
  %v417 = vpop.xlane.xlu0 %416
  %v418 = vcvt.f32.s32 %v417
  %v419 = vcvt.f32.s32 %v413
  %v420 = vshll.u32 %v419, 16
  %v421 = vadd.s32 %v420, %v418
  %v422 = vand.u32 %v407, 65535
  %v423 = vshra.s32 %v407, 16
  %v424 = vcvt.s32.f32 %v422
  %v425 = vcvt.s32.f32 %v423
  %426 = vmin.xlane.f32.xlu0 %v425
  %v427 = vpop.xlane.xlu0 %426
  %vm428 = vcmp.eq.f32.partialorder %v425, %v427
  %v429 = vsel %vm428, %v424, inf
  %430 = vmin.xlane.f32.xlu0 %v429
  %v431 = vpop.xlane.xlu0 %430
  %v432 = vcvt.f32.s32 %v431
  %v433 = vcvt.f32.s32 %v427
  %v434 = vshll.u32 %v433, 16
  %v435 = vadd.s32 %v434, %v432
  %vm436 = vcmp.eq.s32.totalorder %v21, %v421
  %vm437 = vcmp.eq.s32.totalorder %v21, %v435
  %v438 = vsel %vm436, 1, 0
  %v439 = vsel %vm437, 1, 0
  %v440 = vcvt.s32.f32 %v438
  %v441 = vcvt.s32.f32 %v439
  %v442 = vpack.c.bf16 %v441, %v440
  %s443 = scalar_lea.vmem %s1, 128
  %v444 = vld [vmem:[%s443] sm:$0xff]
  %v445 = vld [vmem:[%s443 + $0x8] sm:$0xff]
  %v446 = vld [vmem:[%s443 + $0x10] sm:$0xff]
  %v447 = vld [vmem:[%s443 + $0x18] sm:$0xff]
  %v448 = vld [vmem:[%s443 + $0x20] sm:$0xff]
  %v449 = vld [vmem:[%s443 + $0x28] sm:$0xff]
  %v450 = vld [vmem:[%s443 + $0x30] sm:$0xff]
  %v451 = vld [vmem:[%s443 + $0x38] sm:$0xff]
  %v452 = vld [vmem:[%s443 + $0x40] sm:$0xff]
  %v453 = vld [vmem:[%s443 + $0x48] sm:$0xff]
  %v454 = vld [vmem:[%s443 + $0x50] sm:$0xff]
  %v455 = vld [vmem:[%s443 + $0x58] sm:$0xff]
  %v456 = vld [vmem:[%s443 + $0x60] sm:$0xff]
  %v457 = vld [vmem:[%s443 + $0x68] sm:$0xff]
  %v458 = vld [vmem:[%s443 + $0x70] sm:$0xff]
  %v459 = vld [vmem:[%s443 + $0x78] sm:$0xff]
  %s460 = scalar_lea.vmem %s3, 1
  %v461 = vld [vmem:[%s460] ss:$2 sm:$0x3]
  %v463 = vlaneseq
  %v464 = vshrl.u32 %v463, 7
  %v465 = vsub.s32 0, %v464
  %v466 = vrot.slane %v461, %v465
  %v467 = vlaneseq
  %v468 = vshrl.u32 %v467, 7
  %v469 = vsub.s32 1, %v468
  %v470 = vrot.slane %v461, %v469
  %v489 = vunpack.c.l.b16 %v444
  %v490 = vunpack.c.h.b16 %v444
  %v491 = vunpack.c.l.b16 %v445
  %v492 = vunpack.c.h.b16 %v445
  %v493 = vunpack.c.l.b16 %v446
  %v494 = vunpack.c.h.b16 %v446
  %v495 = vunpack.c.l.b16 %v447
  %v496 = vunpack.c.h.b16 %v447
  %v497 = vunpack.c.l.b16 %v448
  %v498 = vunpack.c.h.b16 %v448
  %v499 = vunpack.c.l.b16 %v449
  %v500 = vunpack.c.h.b16 %v449
  %v501 = vunpack.c.l.b16 %v450
  %v502 = vunpack.c.h.b16 %v450
  %v503 = vunpack.c.l.b16 %v451
  %v504 = vunpack.c.h.b16 %v451
  %v505 = vunpack.c.l.b16 %v452
  %v506 = vunpack.c.h.b16 %v452
  %v507 = vunpack.c.l.b16 %v453
  %v508 = vunpack.c.h.b16 %v453
  %v509 = vunpack.c.l.b16 %v454
  %v510 = vunpack.c.h.b16 %v454
  %v511 = vunpack.c.l.b16 %v455
  %v512 = vunpack.c.h.b16 %v455
  %v513 = vunpack.c.l.b16 %v456
  %v514 = vunpack.c.h.b16 %v456
  %v515 = vunpack.c.l.b16 %v457
  %v516 = vunpack.c.h.b16 %v457
  %v517 = vunpack.c.l.b16 %v458
  %v518 = vunpack.c.h.b16 %v458
  %v519 = vunpack.c.l.b16 %v459
  %v520 = vunpack.c.h.b16 %v459
  %v521 = vpack.c.b16 %v491, %v489
  %v522 = vpack.c.b16 %v492, %v490
  %v523 = vpack.c.b16 %v495, %v493
  %v524 = vpack.c.b16 %v496, %v494
  %v525 = vpack.c.b16 %v499, %v497
  %v526 = vpack.c.b16 %v500, %v498
  %v527 = vpack.c.b16 %v503, %v501
  %v528 = vpack.c.b16 %v504, %v502
  %v529 = vpack.c.b16 %v507, %v505
  %v530 = vpack.c.b16 %v508, %v506
  %v531 = vpack.c.b16 %v511, %v509
  %v532 = vpack.c.b16 %v512, %v510
  %v533 = vpack.c.b16 %v515, %v513
  %v534 = vpack.c.b16 %v516, %v514
  %v535 = vpack.c.b16 %v519, %v517
  %v536 = vpack.c.b16 %v520, %v518
  %553 = vmatprep.subr.bf16.mxu0 %v522
  %554 = vmatpush1.bf16.msra.mxu0 %v521
  %555 = vmatprep.subr.bf16.mxu0 %v524
  %556 = vmatpush1.bf16.msra.mxu0 %v523
  %557 = vmatprep.subr.bf16.mxu0 %v526
  %558 = vmatpush1.bf16.msra.mxu0 %v525
  %559 = vmatprep.subr.bf16.mxu0 %v528
  %560 = vmatpush1.bf16.msra.mxu0 %v527
  %561 = vmatprep.subr.bf16.mxu0 %v530
  %562 = vmatpush1.bf16.msra.mxu0 %v529
  %563 = vmatprep.subr.bf16.mxu0 %v532
  %564 = vmatpush1.bf16.msra.mxu0 %v531
  %565 = vmatprep.subr.bf16.mxu0 %v534
  %566 = vmatpush1.bf16.msra.mxu0 %v533
  %567 = vmatprep.subr.bf16.mxu0 %v536
  %568 = vmatpush1.bf16.msra.mxu0 %v535
  %569 = vmatprep.subr.bf16.mxu0 0
  %570 = vmatpush1.bf16.msra.mxu0 0
  %571 = vmatprep.subr.bf16.mxu0 0
  %572 = vmatpush1.bf16.msra.mxu0 0
  %573 = vmatprep.subr.bf16.mxu0 0
  %574 = vmatpush1.bf16.msra.mxu0 0
  %575 = vmatprep.subr.bf16.mxu0 0
  %576 = vmatpush1.bf16.msra.mxu0 0
  %577 = vmatprep.subr.bf16.mxu0 0
  %578 = vmatpush1.bf16.msra.mxu0 0
  %579 = vmatprep.subr.bf16.mxu0 0
  %580 = vmatpush1.bf16.msra.mxu0 0
  %581 = vmatprep.subr.bf16.mxu0 0
  %582 = vmatpush1.bf16.msra.mxu0 0
  %583 = vmatprep.subr.bf16.mxu0 0
  %584 = vmatpush1.bf16.msra.mxu0 0
  %585 = vmatprep.mubr.bf16.mxu0 0
  %586 = vmatmul.mubr.bf16.gmra.mrb[0].mxu0 %v442
  %v587 = vpop.f32.mrb[0].mxu0
  %v588 = vadd.f32 %v466, %v587
  %v589 = vpop.f32.mrb[0].mxu0
  %v590 = vadd.f32 %v470, %v589
  %v591 = vpop.f32.mrb[0].mxu0
  %v592 = vadd.f32 %v466, %v591
  %v593 = vpop.f32.mrb[0].mxu0
  %v594 = vadd.f32 %v470, %v593
  %595 = vdwg.mxu0
  %v596 = vmul.f32 %v588, %v588
  %v597 = vmul.f32 %v590, %v590
  %v598 = vmul.f32 %v592, %v592
  %v599 = vmul.f32 %v594, %v594
  %v600 = vmul.f32 %v588, %v596
  %v601 = vmul.f32 %v590, %v597
  %v602 = vmul.f32 %v592, %v598
  %v603 = vmul.f32 %v594, %v599
  %v604 = vmul.f32 %v600, 0.044715
  %v605 = vmul.f32 %v601, 0.044715
  %v606 = vmul.f32 %v602, 0.044715
  %v607 = vmul.f32 %v603, 0.044715
  %v608 = vadd.f32 %v588, %v604
  %v609 = vadd.f32 %v590, %v605
  %v610 = vadd.f32 %v592, %v606
  %v611 = vadd.f32 %v594, %v607
  %v612 = vmul.f32 %v608, 0.7978846
  %v613 = vmul.f32 %v609, 0.7978846
  %v614 = vmul.f32 %v610, 0.7978846
  %v615 = vmul.f32 %v611, 0.7978846
  %v616 = vtanh.pop %v612
  %v617 = vtanh.pop %v613
  %v618 = vtanh.pop %v614
  %v619 = vtanh.pop %v615
  %v620 = vadd.f32 %v616, 1.0
  %v621 = vadd.f32 %v617, 1.0
  %v622 = vadd.f32 %v618, 1.0
  %v623 = vadd.f32 %v619, 1.0
  %v624 = vmul.f32 %v620, 0.5
  %v625 = vmul.f32 %v621, 0.5
  %v626 = vmul.f32 %v622, 0.5
  %v627 = vmul.f32 %v623, 0.5
  %v628 = vmul.f32 %v588, %v624
  %v629 = vmul.f32 %v590, %v625
  %v630 = vmul.f32 %v592, %v626
  %v631 = vmul.f32 %v594, %v627
  %v632 = vpack.c.bf16 %v630, %v628
  %v633 = vpack.c.bf16 %v631, %v629
  %s634 = scalar_lea.vmem %s2, 128
  %v635 = vld [vmem:[%s634] sm:$0xf]
  %v636 = vld [vmem:[%s634 + $0x4] sm:$0xf]
  %v637 = vld [vmem:[%s634 + $0x8] sm:$0xf]
  %v638 = vld [vmem:[%s634 + $0xc] sm:$0xf]
  %v639 = vld [vmem:[%s634 + $0x10] sm:$0xf]
  %v640 = vld [vmem:[%s634 + $0x14] sm:$0xf]
  %v641 = vld [vmem:[%s634 + $0x18] sm:$0xf]
  %v642 = vld [vmem:[%s634 + $0x1c] sm:$0xf]
  %v643 = vld [vmem:[%s634 + $0x20] sm:$0xf]
  %v644 = vld [vmem:[%s634 + $0x24] sm:$0xf]
  %v645 = vld [vmem:[%s634 + $0x28] sm:$0xf]
  %v646 = vld [vmem:[%s634 + $0x2c] sm:$0xf]
  %v647 = vld [vmem:[%s634 + $0x30] sm:$0xf]
  %v648 = vld [vmem:[%s634 + $0x34] sm:$0xf]
  %v649 = vld [vmem:[%s634 + $0x38] sm:$0xf]
  %v650 = vld [vmem:[%s634 + $0x3c] sm:$0xf]
  %v651 = vld [vmem:[%s634 + $0x40] sm:$0xf]
  %v652 = vld [vmem:[%s634 + $0x44] sm:$0xf]
  %v653 = vld [vmem:[%s634 + $0x48] sm:$0xf]
  %v654 = vld [vmem:[%s634 + $0x4c] sm:$0xf]
  %v655 = vld [vmem:[%s634 + $0x50] sm:$0xf]
  %v656 = vld [vmem:[%s634 + $0x54] sm:$0xf]
  %v657 = vld [vmem:[%s634 + $0x58] sm:$0xf]
  %v658 = vld [vmem:[%s634 + $0x5c] sm:$0xf]
  %v659 = vld [vmem:[%s634 + $0x60] sm:$0xf]
  %v660 = vld [vmem:[%s634 + $0x64] sm:$0xf]
  %v661 = vld [vmem:[%s634 + $0x68] sm:$0xf]
  %v662 = vld [vmem:[%s634 + $0x6c] sm:$0xf]
  %v663 = vld [vmem:[%s634 + $0x70] sm:$0xf]
  %v664 = vld [vmem:[%s634 + $0x74] sm:$0xf]
  %v665 = vld [vmem:[%s634 + $0x78] sm:$0xf]
  %v666 = vld [vmem:[%s634 + $0x7c] sm:$0xf]
  %v667 = vld [vmem:[%s3 + $0x5] sm:$0x1]
  %v668 = vlaneseq
  %v669 = vshrl.u32 %v668, 7
  %v670 = vsub.s32 0, %v669
  %v671 = vrot.slane %v667, %v670
  %v704 = vunpack.c.l.b16 %v635
  %v705 = vunpack.c.l.b16 %v636
  %v706 = vunpack.c.l.b16 %v637
  %v707 = vunpack.c.l.b16 %v638
  %v708 = vunpack.c.l.b16 %v639
  %v709 = vunpack.c.l.b16 %v640
  %v710 = vunpack.c.l.b16 %v641
  %v711 = vunpack.c.l.b16 %v642
  %v712 = vunpack.c.l.b16 %v643
  %v713 = vunpack.c.l.b16 %v644
  %v714 = vunpack.c.l.b16 %v645
  %v715 = vunpack.c.l.b16 %v646
  %v716 = vunpack.c.l.b16 %v647
  %v717 = vunpack.c.l.b16 %v648
  %v718 = vunpack.c.l.b16 %v649
  %v719 = vunpack.c.l.b16 %v650
  %v720 = vunpack.c.l.b16 %v651
  %v721 = vunpack.c.l.b16 %v652
  %v722 = vunpack.c.l.b16 %v653
  %v723 = vunpack.c.l.b16 %v654
  %v724 = vunpack.c.l.b16 %v655
  %v725 = vunpack.c.l.b16 %v656
  %v726 = vunpack.c.l.b16 %v657
  %v727 = vunpack.c.l.b16 %v658
  %v728 = vunpack.c.l.b16 %v659
  %v729 = vunpack.c.l.b16 %v660
  %v730 = vunpack.c.l.b16 %v661
  %v731 = vunpack.c.l.b16 %v662
  %v732 = vunpack.c.l.b16 %v663
  %v733 = vunpack.c.l.b16 %v664
  %v734 = vunpack.c.l.b16 %v665
  %v735 = vunpack.c.l.b16 %v666
  %v736 = vpack.c.b16 %v705, %v704
  %v737 = vpack.c.b16 %v707, %v706
  %v738 = vpack.c.b16 %v709, %v708
  %v739 = vpack.c.b16 %v711, %v710
  %v740 = vpack.c.b16 %v713, %v712
  %v741 = vpack.c.b16 %v715, %v714
  %v742 = vpack.c.b16 %v717, %v716
  %v743 = vpack.c.b16 %v719, %v718
  %v744 = vpack.c.b16 %v721, %v720
  %v745 = vpack.c.b16 %v723, %v722
  %v746 = vpack.c.b16 %v725, %v724
  %v747 = vpack.c.b16 %v727, %v726
  %v748 = vpack.c.b16 %v729, %v728
  %v749 = vpack.c.b16 %v731, %v730
  %v750 = vpack.c.b16 %v733, %v732
  %v751 = vpack.c.b16 %v735, %v734
  %768 = vmatprep.subr.bf16.mxu0 0
  %769 = vmatpush1.bf16.msra.mxu0 %v736
  %770 = vmatprep.subr.bf16.mxu0 0
  %771 = vmatpush1.bf16.msra.mxu0 %v737
  %772 = vmatprep.subr.bf16.mxu0 0
  %773 = vmatpush1.bf16.msra.mxu0 %v738
  %774 = vmatprep.subr.bf16.mxu0 0
  %775 = vmatpush1.bf16.msra.mxu0 %v739
  %776 = vmatprep.subr.bf16.mxu0 0
  %777 = vmatpush1.bf16.msra.mxu0 %v740
  %778 = vmatprep.subr.bf16.mxu0 0
  %779 = vmatpush1.bf16.msra.mxu0 %v741
  %780 = vmatprep.subr.bf16.mxu0 0
  %781 = vmatpush1.bf16.msra.mxu0 %v742
  %782 = vmatprep.subr.bf16.mxu0 0
  %783 = vmatpush1.bf16.msra.mxu0 %v743
  %784 = vmatprep.subr.bf16.mxu0 0
  %785 = vmatpush1.bf16.msra.mxu0 %v744
  %786 = vmatprep.subr.bf16.mxu0 0
  %787 = vmatpush1.bf16.msra.mxu0 %v745
  %788 = vmatprep.subr.bf16.mxu0 0
  %789 = vmatpush1.bf16.msra.mxu0 %v746
  %790 = vmatprep.subr.bf16.mxu0 0
  %791 = vmatpush1.bf16.msra.mxu0 %v747
  %792 = vmatprep.subr.bf16.mxu0 0
  %793 = vmatpush1.bf16.msra.mxu0 %v748
  %794 = vmatprep.subr.bf16.mxu0 0
  %795 = vmatpush1.bf16.msra.mxu0 %v749
  %796 = vmatprep.subr.bf16.mxu0 0
  %797 = vmatpush1.bf16.msra.mxu0 %v750
  %798 = vmatprep.subr.bf16.mxu0 0
  %799 = vmatpush1.bf16.msra.mxu0 %v751
  %800 = vmatprep.mubr.bf16.mxu0 %v633
  %801 = vmatmul.mubr.bf16.gmra.mrb[0].mxu0 %v632
  %v802 = vpop.f32.mrb[0].mxu0
  %v803 = vadd.f32 %v671, %v802
  %v804 = vpop.f32.mrb[0].mxu0
  %v805 = vpop.f32.mrb[0].mxu0
  %v806 = vadd.f32 %v671, %v805
  %v807 = vpop.f32.mrb[0].mxu0
  %808 = vdwg.mxu0
  %s809 = scalar_lea.vmem %s4, 16
  %810 = vst [vmem:[%s809] sm:$0xff] %v803
  %811 = vst [vmem:[%s809 + $0x8] sm:$0xff] %v806
  // Predicated region
  $region18: #{detec_correct_pipeline.1} parent=0 // pred_check
    _
  $region19: #{detec_correct_pipeline.1} parent=0 // pred_check_branch
    %813 = sbr.rel (0) target = $region21
  $region20: #{detec_correct_pipeline.1} parent=0 // pred_region
    _
  $region21: #{detec_correct_pipeline.1} parent=0 // pred_fallthru
    _
  // Predicated region
  $region22: #{detec_correct_pipeline.1} parent=0 // pred_check
    _
  $region23: #{detec_correct_pipeline.1} parent=0 // pred_check_branch
    %815 = sbr.rel (0) target = $region25
  $region24: #{detec_correct_pipeline.1} parent=0 // pred_region
    _
  $region25: #{detec_correct_pipeline.1} parent=0 // pred_fallthru
    _

</llo_original>
